<compile_context>
chip_gen: v7x
topology: tpu7x:2x2x1
jax: 0.10.0
libtpu: 0.0.40
codegen_flags: <defaults>
</compile_context>

<pallas_src>
import jax
import jax.numpy as jnp
from jax.experimental import pallas as pl
from jax.experimental.pallas import tpu as pltpu

MAX_SESSIONS = 8
PATTERN_LIST = ['WSW', 'WSWSWL', 'WSWSWSWL', 'WSWSWSWL+WSWS', '2×WSWSWL', '2×WSWSWSWL']
NUM_PATTERNS = len(PATTERN_LIST)
HIDDEN = 64
HEAD_DIM = NUM_PATTERNS + MAX_SESSIONS + 2   # 6 + 8 + 2 = 16 fused head outputs
HEAD_PAD = 128                               # lane-dense output width (zero-padded)
TB = 256                                     # batch tile: multiple of 256 fills the MXU rows


def _pomodoro_kernel(x_ref,
                     w1_ref, b1_ref,
                     w2_ref, b2_ref,
                     wh_ref, bh_ref,
                     out_ref):
    # ---- layer 1: Linear(1, 64) + ReLU -------------------------------------
    # K=1 matmul is a rank-1 outer product: do it on the VPU (broadcast mul+add)
    # instead of paying an MXU push/drain for zero accumulation depth.
    x = x_ref[...]                                               # (TB, 1)
    h = x * w1_ref[...] + b1_ref[...]                            # (TB, 64)
    h = jnp.maximum(h, 0.0)

    # ---- layer 2: Linear(64, 64) + ReLU (MXU) -------------------------------
    h = jnp.dot(h, w2_ref[...], preferred_element_type=jnp.float32) + b2_ref[...]
    h = jnp.maximum(h, 0.0)                                      # (TB, 64)

    # ---- fused heads: one lane-dense (TB, 128) matmul ------------------------
    # Columns 0:6 = pattern logits, 6:14 = sessions, 14:16 = breaks, 16:128 = 0.
    out_ref[...] = jnp.dot(h, wh_ref[...],
                           preferred_element_type=jnp.float32) + bh_ref[...]


def pomodoro_forward(x, params, *, tb=TB):
    """x: (B, 1) float32. Returns (pattern_logits, sessions_pred, breaks_pred)."""
    (w1, b1, w2, b2, wp, bp, ws, bs, wb, bb) = params
    B = x.shape[0]

    # Fuse the three head weights/biases and zero-pad to a lane-dense 128-wide
    # output. Pad columns are exactly zero so the wrapper slices are bit-exact.
    wh = jnp.zeros((HIDDEN, HEAD_PAD), jnp.float32).at[:, :HEAD_DIM].set(
        jnp.concatenate([wp, ws, wb], axis=1))
    bh = jnp.zeros((1, HEAD_PAD), jnp.float32).at[:, :HEAD_DIM].set(
        jnp.concatenate([bp, bs, bb], axis=1))

    # Pad batch to a multiple of the batch tile (tb is a multiple of 8, so the
    # (tb, 1) / (tb, 128) blocks satisfy the (8, 128) tiling constraint).
    num_tiles = pl.cdiv(B, tb)
    B_pad = num_tiles * tb
    x_pad = jnp.pad(x, ((0, B_pad - B), (0, 0)))

    # Weights: full-array blocks, index_map -> 0s so they stay VMEM-resident
    # across grid iterations (no per-step weight DMA).
    def weight_spec(a):
        return pl.BlockSpec(a.shape, lambda i: (0,) * a.ndim)

    out = pl.pallas_call(
        _pomodoro_kernel,
        out_shape=jax.ShapeDtypeStruct((B_pad, HEAD_PAD), jnp.float32),
        grid=(num_tiles,),
        in_specs=[
            pl.BlockSpec((tb, 1), lambda i: (i, 0)),          # x: batch-tiled
            weight_spec(w1), weight_spec(b1),
            weight_spec(w2), weight_spec(b2),
            weight_spec(wh), weight_spec(bh),
        ],
        out_specs=pl.BlockSpec((tb, HEAD_PAD), lambda i: (i, 0)),
        compiler_params=pltpu.CompilerParams(
            dimension_semantics=("parallel",)),               # 2 TCs on v7x
    )(x_pad, w1, b1, w2, b2, wh, bh)

    pat = out[:B, :NUM_PATTERNS]
    ses = out[:B, NUM_PATTERNS:NUM_PATTERNS + MAX_SESSIONS]
    brk = out[:B, NUM_PATTERNS + MAX_SESSIONS:HEAD_DIM]
    return pat, ses, brk


def init_params(key):
    """Deterministic parameter init matching the PyTorch module's shapes.

    Weights stored as (in_features, out_features); biases as (1, out_features)
    so they broadcast along the batch (sublane) axis inside the kernel.
    """
    def linear(key, fan_in, fan_out):
        kw, kb = jax.random.split(key)
        bound = 1.0 / jnp.sqrt(jnp.maximum(fan_in, 1)).astype(jnp.float32)
        w = jax.random.uniform(kw, (fan_in, fan_out), jnp.float32, -bound, bound)
        b = jax.random.uniform(kb, (1, fan_out), jnp.float32, -bound, bound)
        return w, b

    k1, k2, k3, k4, k5 = jax.random.split(key, 5)
    w1, b1 = linear(k1, 1, HIDDEN)
    w2, b2 = linear(k2, HIDDEN, HIDDEN)
    wp, bp = linear(k3, HIDDEN, NUM_PATTERNS)
    ws, bs = linear(k4, HIDDEN, MAX_SESSIONS)
    wb, bb = linear(k5, HIDDEN, 2)
    return (w1, b1, w2, b2, wp, bp, ws, bs, wb, bb)


def reference_forward(x, params):
    """Pure-JAX reference for correctness checking."""
    (w1, b1, w2, b2, wp, bp, ws, bs, wb, bb) = params
    h = jnp.maximum(x @ w1 + b1, 0.0)
    h = jnp.maximum(h @ w2 + b2, 0.0)
    return (h @ wp + bp, h @ ws + bs, h @ wb + bb)


if __name__ == "__main__":
    key = jax.random.PRNGKey(0)
    k_params, k_x = jax.random.split(key)

    params = init_params(k_params)
    B = 8
    # x mimics a single scalar feature per example (e.g. normalized task minutes)
    x = jax.random.uniform(k_x, (B, 1), jnp.float32, 0.0, 1.0)

    pat, ses, brk = pomodoro_forward(x, params)
    jax.block_until_ready((pat, ses, brk))

    pat_ref, ses_ref, brk_ref = reference_forward(x, params)
    assert pat.shape == (B, NUM_PATTERNS)
    assert ses.shape == (B, MAX_SESSIONS)
    assert brk.shape == (B, 2)
    assert jnp.allclose(pat, pat_ref, atol=1e-5)
    assert jnp.allclose(ses, ses_ref, atol=1e-5)
    assert jnp.allclose(brk, brk_ref, atol=1e-5)

    print("KERNEL_OK")
</pallas_src>

<mosaic_0001>
module attributes {stable_mosaic.version = 11 : i64} {
  func.func @_pomodoro_kernel(%arg0: i32, %arg1: memref<256x1xf32, #tpu.memory_space<vmem>>, %arg2: memref<1x64xf32, #tpu.memory_space<vmem>>, %arg3: memref<1x64xf32, #tpu.memory_space<vmem>>, %arg4: memref<64x64xf32, #tpu.memory_space<vmem>>, %arg5: memref<1x64xf32, #tpu.memory_space<vmem>>, %arg6: memref<64x128xf32, #tpu.memory_space<vmem>>, %arg7: memref<1x128xf32, #tpu.memory_space<vmem>>, %arg8: memref<256x128xf32, #tpu.memory_space<vmem>>) attributes {dimension_semantics = [#tpu.dimension_semantics<parallel>], iteration_bounds = array<i64: 1>, scalar_prefetch = 0 : i64, scratch_operands = 0 : i64, tpu.core_type = #tpu.core_type<tc>, window_params = [{transform_indices = @transform_0, window_bounds = array<i64: 256, 1>}, {pipeline_mode = #tpu.pipeline_mode<synchronous>, transform_indices = @transform_1, window_bounds = array<i64: 1, 64>}, {pipeline_mode = #tpu.pipeline_mode<synchronous>, transform_indices = @transform_2, window_bounds = array<i64: 1, 64>}, {pipeline_mode = #tpu.pipeline_mode<synchronous>, transform_indices = @transform_3, window_bounds = array<i64: 64, 64>}, {pipeline_mode = #tpu.pipeline_mode<synchronous>, transform_indices = @transform_4, window_bounds = array<i64: 1, 64>}, {pipeline_mode = #tpu.pipeline_mode<synchronous>, transform_indices = @transform_5, window_bounds = array<i64: 64, 128>}, {pipeline_mode = #tpu.pipeline_mode<synchronous>, transform_indices = @transform_6, window_bounds = array<i64: 1, 128>}, {transform_indices = @transform_7, window_bounds = array<i64: 256, 128>}]} {
    %c0 = arith.constant 0 : index
    %c0_0 = arith.constant 0 : index
    %0 = vector.load %arg1[%c0, %c0_0] : memref<256x1xf32, #tpu.memory_space<vmem>>, vector<256x1xf32>
    %c0_1 = arith.constant 0 : index
    %c0_2 = arith.constant 0 : index
    %1 = vector.load %arg2[%c0_1, %c0_2] : memref<1x64xf32, #tpu.memory_space<vmem>>, vector<1x64xf32>
    %2 = vector.broadcast %0 : vector<256x1xf32> to vector<256x64xf32>
    %3 = vector.broadcast %1 : vector<1x64xf32> to vector<256x64xf32>
    %4 = arith.mulf %2, %3 : vector<256x64xf32>
    %c0_3 = arith.constant 0 : index
    %c0_4 = arith.constant 0 : index
    %5 = vector.load %arg3[%c0_3, %c0_4] : memref<1x64xf32, #tpu.memory_space<vmem>>, vector<1x64xf32>
    %6 = vector.broadcast %5 : vector<1x64xf32> to vector<256x64xf32>
    %7 = arith.addf %4, %6 : vector<256x64xf32>
    %cst = arith.constant 0.000000e+00 : f32
    %8 = vector.broadcast %cst : f32 to vector<256x64xf32>
    %9 = arith.maximumf %7, %8 : vector<256x64xf32>
    %c0_5 = arith.constant 0 : index
    %c0_6 = arith.constant 0 : index
    %10 = vector.load %arg4[%c0_5, %c0_6] : memref<64x64xf32, #tpu.memory_space<vmem>>, vector<64x64xf32>
    %cst_7 = arith.constant dense<0.000000e+00> : vector<256x64xf32>
    %11 = tpu.matmul %9, %10, %cst_7 {dimension_numbers = #tpu.dot_dimension_numbers<[1], [0], [0], [1], [0, 0, 1, 1], [], []>} : vector<256x64xf32>, vector<64x64xf32>, vector<256x64xf32> -> vector<256x64xf32>
    %c0_8 = arith.constant 0 : index
    %c0_9 = arith.constant 0 : index
    %12 = vector.load %arg5[%c0_8, %c0_9] : memref<1x64xf32, #tpu.memory_space<vmem>>, vector<1x64xf32>
    %13 = vector.broadcast %12 : vector<1x64xf32> to vector<256x64xf32>
    %14 = arith.addf %11, %13 : vector<256x64xf32>
    %cst_10 = arith.constant 0.000000e+00 : f32
    %15 = vector.broadcast %cst_10 : f32 to vector<256x64xf32>
    %16 = arith.maximumf %14, %15 : vector<256x64xf32>
    %c0_11 = arith.constant 0 : index
    %c0_12 = arith.constant 0 : index
    %17 = vector.load %arg6[%c0_11, %c0_12] : memref<64x128xf32, #tpu.memory_space<vmem>>, vector<64x128xf32>
    %cst_13 = arith.constant dense<0.000000e+00> : vector<256x128xf32>
    %18 = tpu.matmul %16, %17, %cst_13 {dimension_numbers = #tpu.dot_dimension_numbers<[1], [0], [0], [1], [0, 0, 1, 1], [], []>} : vector<256x64xf32>, vector<64x128xf32>, vector<256x128xf32> -> vector<256x128xf32>
    %c0_14 = arith.constant 0 : index
    %c0_15 = arith.constant 0 : index
    %19 = vector.load %arg7[%c0_14, %c0_15] : memref<1x128xf32, #tpu.memory_space<vmem>>, vector<1x128xf32>
    %20 = vector.broadcast %19 : vector<1x128xf32> to vector<256x128xf32>
    %21 = arith.addf %18, %20 : vector<256x128xf32>
    %c0_16 = arith.constant 0 : index
    %c0_17 = arith.constant 0 : index
    %22 = vector.load %arg8[%c0_16, %c0_17] : memref<256x128xf32, #tpu.memory_space<vmem>>, vector<256x128xf32>
    tpu.vector_store %arg8[%c0_16, %c0_17], %21 {strides = array<i32>} : memref<256x128xf32, #tpu.memory_space<vmem>>, vector<256x128xf32>,
    return
  }
  func.func @transform_0(%arg0: i32) -> (i32, i32) {
    %c0_i32 = arith.constant 0 : i32
    %c0_i32_0 = arith.constant 0 : i32
    return %arg0, %c0_i32 : i32, i32
  }
  func.func @transform_1(%arg0: i32) -> (i32, i32) {
    %c0_i32 = arith.constant 0 : i32
    %c0_i32_0 = arith.constant 0 : i32
    %c0_i32_1 = arith.constant 0 : i32
    return %c0_i32, %c0_i32_0 : i32, i32
  }
  func.func @transform_2(%arg0: i32) -> (i32, i32) {
    %c0_i32 = arith.constant 0 : i32
    %c0_i32_0 = arith.constant 0 : i32
    %c0_i32_1 = arith.constant 0 : i32
    return %c0_i32, %c0_i32_0 : i32, i32
  }
  func.func @transform_3(%arg0: i32) -> (i32, i32) {
    %c0_i32 = arith.constant 0 : i32
    %c0_i32_0 = arith.constant 0 : i32
    %c0_i32_1 = arith.constant 0 : i32
    return %c0_i32, %c0_i32_0 : i32, i32
  }
  func.func @transform_4(%arg0: i32) -> (i32, i32) {
    %c0_i32 = arith.constant 0 : i32
    %c0_i32_0 = arith.constant 0 : i32
    %c0_i32_1 = arith.constant 0 : i32
    return %c0_i32, %c0_i32_0 : i32, i32
  }
  func.func @transform_5(%arg0: i32) -> (i32, i32) {
    %c0_i32 = arith.constant 0 : i32
    %c0_i32_0 = arith.constant 0 : i32
    %c0_i32_1 = arith.constant 0 : i32
    return %c0_i32, %c0_i32_0 : i32, i32
  }
  func.func @transform_6(%arg0: i32) -> (i32, i32) {
    %c0_i32 = arith.constant 0 : i32
    %c0_i32_0 = arith.constant 0 : i32
    %c0_i32_1 = arith.constant 0 : i32
    return %c0_i32, %c0_i32_0 : i32, i32
  }
  func.func @transform_7(%arg0: i32) -> (i32, i32) {
    %c0_i32 = arith.constant 0 : i32
    %c0_i32_0 = arith.constant 0 : i32
    return %arg0, %c0_i32 : i32, i32
  }
}

</mosaic_0001>

<llo_original>
// kernel: tpu_custom_call.1
$region0: #{tpu_custom_call.1}
  #allocation0 [shape = 'u32[]', space=smem, size = 0x4, offset = 0x4, fixed_abs, tag = 'smem constant byte address 0x4 - core index']
  #allocation1 [shape = 'u32[144,128]{1,0:T(1,128)}', space=vmem, size = 0x12000, scoped, tag = 'internal scratch']
  %s0 = inlined_call_operand.vmem [shape: f32[256,1], index: 0, kind: input, shape index: {}]
  %s1 = inlined_call_operand.vmem [shape: f32[1,64], index: 1, kind: input, shape index: {}]
  %s2 = inlined_call_operand.vmem [shape: f32[1,64], index: 2, kind: input, shape index: {}]
  %s3 = inlined_call_operand.vmem [shape: f32[64,64], index: 3, kind: input, shape index: {}]
  %s4 = inlined_call_operand.vmem [shape: f32[1,64], index: 4, kind: input, shape index: {}]
  %s5 = inlined_call_operand.vmem [shape: f32[64,128], index: 5, kind: input, shape index: {}]
  %s6 = inlined_call_operand.vmem [shape: f32[1,128], index: 6, kind: input, shape index: {}]
  %s7 = inlined_call_operand.hbm [shape: f32[256,128], index: 7, kind: output, shape index: {}]
  %s8 = sld [smem:[#allocation0]]
  $region38: #{tpu_custom_call.1} parent=0
    _
  %s10 = ssub.s32 1, %s8
  %s11 = scalar_select 0, %s10, %s8
  $region1: #{tpu_custom_call.1} parent=0
    #allocation2 [shape = 'u8[131072]{0}', space=vmem, size = 0x20000, scoped, tag = 'output window, operand 0, single buffered']
    #allocation3 [shape = 's32[1]{0}', space=sflag, size = 0x4, scoped, tag = 'scoped memory for tpu_custom_call.1']
    %12 = vsyncpa [#allocation3], 0
    // Predicated region
    $region2: #{tpu_custom_call.1} parent=1 // pred_check
      _
    $region3: #{tpu_custom_call.1} parent=1 // pred_check_branch
      %14 = sbr.rel (0) target = $region5
    $region4: #{tpu_custom_call.1} parent=1 // pred_region
      _
    $region5: #{tpu_custom_call.1} parent=1 // pred_fallthru
      _
    // Predicated region
    $region6: #{tpu_custom_call.1} parent=1 // pred_check
      _
    $region7: #{tpu_custom_call.1} parent=1 // pred_check_branch
      %16 = sbr.rel (0) target = $region9
    $region8: #{tpu_custom_call.1} parent=1 // pred_region
      _
    $region9: #{tpu_custom_call.1} parent=1 // pred_fallthru
      _
    // Predicated region
    $region10: #{tpu_custom_call.1} parent=1 // pred_check
      _
    $region11: #{tpu_custom_call.1} parent=1 // pred_check_branch
      %18 = sbr.rel (0) target = $region13
    $region12: #{tpu_custom_call.1} parent=1 // pred_region
      _
    $region13: #{tpu_custom_call.1} parent=1 // pred_fallthru
      _
    // Predicated region
    $region14: #{tpu_custom_call.1} parent=1 // pred_check
      _
    $region15: #{tpu_custom_call.1} parent=1 // pred_check_branch
      %20 = sbr.rel (0) target = $region17
    $region16: #{tpu_custom_call.1} parent=1 // pred_region
      _
    $region17: #{tpu_custom_call.1} parent=1 // pred_fallthru
      _
    // Predicated region
    $region18: #{tpu_custom_call.1} parent=1 // pred_check
      _
    $region19: #{tpu_custom_call.1} parent=1 // pred_check_branch
      %22 = sbr.rel (0) target = $region21
    $region20: #{tpu_custom_call.1} parent=1 // pred_region
      _
    $region21: #{tpu_custom_call.1} parent=1 // pred_fallthru
      _
    // Predicated region
    $region22: #{tpu_custom_call.1} parent=1 // pred_check
      _
    $region23: #{tpu_custom_call.1} parent=1 // pred_check_branch
      %24 = sbr.rel (0) target = $region25
    $region24: #{tpu_custom_call.1} parent=1 // pred_region
      _
    $region25: #{tpu_custom_call.1} parent=1 // pred_fallthru
      _
    // Predicated region
    $region26: #{tpu_custom_call.1} parent=1 // pred_check
      _
    $region27: #{tpu_custom_call.1} parent=1 // pred_check_branch
      %26 = sbr.rel (0) target = $region29
    $region28: #{tpu_custom_call.1} parent=1 // pred_region
      _
    $region29: #{tpu_custom_call.1} parent=1 // pred_fallthru
      _
    %v27 = vld [vmem:[%s0] sm:$0xff]
    %v28 = vld [vmem:[%s0 + $0x8] sm:$0xff]
    %v29 = vld [vmem:[%s0 + $0x10] sm:$0xff]
    %v30 = vld [vmem:[%s0 + $0x18] sm:$0xff]
    %v31 = vld [vmem:[%s0 + $0x20] sm:$0xff]
    %v32 = vld [vmem:[%s0 + $0x28] sm:$0xff]
    %v33 = vld [vmem:[%s0 + $0x30] sm:$0xff]
    %v34 = vld [vmem:[%s0 + $0x38] sm:$0xff]
    %v35 = vld [vmem:[%s0 + $0x40] sm:$0xff]
    %v36 = vld [vmem:[%s0 + $0x48] sm:$0xff]
    %v37 = vld [vmem:[%s0 + $0x50] sm:$0xff]
    %v38 = vld [vmem:[%s0 + $0x58] sm:$0xff]
    %v39 = vld [vmem:[%s0 + $0x60] sm:$0xff]
    %v40 = vld [vmem:[%s0 + $0x68] sm:$0xff]
    %v41 = vld [vmem:[%s0 + $0x70] sm:$0xff]
    %v42 = vld [vmem:[%s0 + $0x78] sm:$0xff]
    %v43 = vld [vmem:[%s0 + $0x80] sm:$0xff]
    %v44 = vld [vmem:[%s0 + $0x88] sm:$0xff]
    %v45 = vld [vmem:[%s0 + $0x90] sm:$0xff]
    %v46 = vld [vmem:[%s0 + $0x98] sm:$0xff]
    %v47 = vld [vmem:[%s0 + $0xa0] sm:$0xff]
    %v48 = vld [vmem:[%s0 + $0xa8] sm:$0xff]
    %v49 = vld [vmem:[%s0 + $0xb0] sm:$0xff]
    %v50 = vld [vmem:[%s0 + $0xb8] sm:$0xff]
    %v51 = vld [vmem:[%s0 + $0xc0] sm:$0xff]
    %v52 = vld [vmem:[%s0 + $0xc8] sm:$0xff]
    %v53 = vld [vmem:[%s0 + $0xd0] sm:$0xff]
    %v54 = vld [vmem:[%s0 + $0xd8] sm:$0xff]
    %v55 = vld [vmem:[%s0 + $0xe0] sm:$0xff]
    %v56 = vld [vmem:[%s0 + $0xe8] sm:$0xff]
    %v57 = vld [vmem:[%s0 + $0xf0] sm:$0xff]
    %v58 = vld [vmem:[%s0 + $0xf8] sm:$0xff]
    %v59 = vld [vmem:[%s1] sm:$0x1]
    %61 = vset.pattern.permute.xlu0 0
    %62 = vperm.xlu0 %61, %v27
    %v63 = vpop.permute.xlu0 %62
    %66 = vset.pattern.permute.xlu0 0
    %67 = vperm.xlu0 %66, %v28
    %v68 = vpop.permute.xlu0 %67
    %71 = vset.pattern.permute.xlu0 0
    %72 = vperm.xlu0 %71, %v29
    %v73 = vpop.permute.xlu0 %72
    %76 = vset.pattern.permute.xlu0 0
    %77 = vperm.xlu0 %76, %v30
    %v78 = vpop.permute.xlu0 %77
    %81 = vset.pattern.permute.xlu0 0
    %82 = vperm.xlu0 %81, %v31
    %v83 = vpop.permute.xlu0 %82
    %86 = vset.pattern.permute.xlu0 0
    %87 = vperm.xlu0 %86, %v32
    %v88 = vpop.permute.xlu0 %87
    %91 = vset.pattern.permute.xlu0 0
    %92 = vperm.xlu0 %91, %v33
    %v93 = vpop.permute.xlu0 %92
    %96 = vset.pattern.permute.xlu0 0
    %97 = vperm.xlu0 %96, %v34
    %v98 = vpop.permute.xlu0 %97
    %101 = vset.pattern.permute.xlu0 0
    %102 = vperm.xlu0 %101, %v35
    %v103 = vpop.permute.xlu0 %102
    %106 = vset.pattern.permute.xlu0 0
    %107 = vperm.xlu0 %106, %v36
    %v108 = vpop.permute.xlu0 %107
    %111 = vset.pattern.permute.xlu0 0
    %112 = vperm.xlu0 %111, %v37
    %v113 = vpop.permute.xlu0 %112
    %116 = vset.pattern.permute.xlu0 0
    %117 = vperm.xlu0 %116, %v38
    %v118 = vpop.permute.xlu0 %117
    %121 = vset.pattern.permute.xlu0 0
    %122 = vperm.xlu0 %121, %v39
    %v123 = vpop.permute.xlu0 %122
    %126 = vset.pattern.permute.xlu0 0
    %127 = vperm.xlu0 %126, %v40
    %v128 = vpop.permute.xlu0 %127
    %131 = vset.pattern.permute.xlu0 0
    %132 = vperm.xlu0 %131, %v41
    %v133 = vpop.permute.xlu0 %132
    %136 = vset.pattern.permute.xlu0 0
    %137 = vperm.xlu0 %136, %v42
    %v138 = vpop.permute.xlu0 %137
    %141 = vset.pattern.permute.xlu0 0
    %142 = vperm.xlu0 %141, %v43
    %v143 = vpop.permute.xlu0 %142
    %146 = vset.pattern.permute.xlu0 0
    %147 = vperm.xlu0 %146, %v44
    %v148 = vpop.permute.xlu0 %147
    %151 = vset.pattern.permute.xlu0 0
    %152 = vperm.xlu0 %151, %v45
    %v153 = vpop.permute.xlu0 %152
    %156 = vset.pattern.permute.xlu0 0
    %157 = vperm.xlu0 %156, %v46
    %v158 = vpop.permute.xlu0 %157
    %161 = vset.pattern.permute.xlu0 0
    %162 = vperm.xlu0 %161, %v47
    %v163 = vpop.permute.xlu0 %162
    %166 = vset.pattern.permute.xlu0 0
    %167 = vperm.xlu0 %166, %v48
    %v168 = vpop.permute.xlu0 %167
    %171 = vset.pattern.permute.xlu0 0
    %172 = vperm.xlu0 %171, %v49
    %v173 = vpop.permute.xlu0 %172
    %176 = vset.pattern.permute.xlu0 0
    %177 = vperm.xlu0 %176, %v50
    %v178 = vpop.permute.xlu0 %177
    %181 = vset.pattern.permute.xlu0 0
    %182 = vperm.xlu0 %181, %v51
    %v183 = vpop.permute.xlu0 %182
    %186 = vset.pattern.permute.xlu0 0
    %187 = vperm.xlu0 %186, %v52
    %v188 = vpop.permute.xlu0 %187
    %191 = vset.pattern.permute.xlu0 0
    %192 = vperm.xlu0 %191, %v53
    %v193 = vpop.permute.xlu0 %192
    %196 = vset.pattern.permute.xlu0 0
    %197 = vperm.xlu0 %196, %v54
    %v198 = vpop.permute.xlu0 %197
    %201 = vset.pattern.permute.xlu0 0
    %202 = vperm.xlu0 %201, %v55
    %v203 = vpop.permute.xlu0 %202
    %206 = vset.pattern.permute.xlu0 0
    %207 = vperm.xlu0 %206, %v56
    %v208 = vpop.permute.xlu0 %207
    %211 = vset.pattern.permute.xlu0 0
    %212 = vperm.xlu0 %211, %v57
    %v213 = vpop.permute.xlu0 %212
    %216 = vset.pattern.permute.xlu0 0
    %217 = vperm.xlu0 %216, %v58
    %v218 = vpop.permute.xlu0 %217
    %v221 = vlaneseq
    %v222 = vshrl.u32 %v221, 7
    %v223 = vsub.s32 0, %v222
    %v224 = vrot.slane %v59, %v223
    %v226 = vmul.f32 %v63, %v224
    %v227 = vmul.f32 %v68, %v224
    %v228 = vmul.f32 %v73, %v224
    %v229 = vmul.f32 %v78, %v224
    %v230 = vmul.f32 %v83, %v224
    %v231 = vmul.f32 %v88, %v224
    %v232 = vmul.f32 %v93, %v224
    %v233 = vmul.f32 %v98, %v224
    %v234 = vmul.f32 %v103, %v224
    %v235 = vmul.f32 %v108, %v224
    %v236 = vmul.f32 %v113, %v224
    %v237 = vmul.f32 %v118, %v224
    %v238 = vmul.f32 %v123, %v224
    %v239 = vmul.f32 %v128, %v224
    %v240 = vmul.f32 %v133, %v224
    %v241 = vmul.f32 %v138, %v224
    %v242 = vmul.f32 %v143, %v224
    %v243 = vmul.f32 %v148, %v224
    %v244 = vmul.f32 %v153, %v224
    %v245 = vmul.f32 %v158, %v224
    %v246 = vmul.f32 %v163, %v224
    %v247 = vmul.f32 %v168, %v224
    %v248 = vmul.f32 %v173, %v224
    %v249 = vmul.f32 %v178, %v224
    %v250 = vmul.f32 %v183, %v224
    %v251 = vmul.f32 %v188, %v224
    %v252 = vmul.f32 %v193, %v224
    %v253 = vmul.f32 %v198, %v224
    %v254 = vmul.f32 %v203, %v224
    %v255 = vmul.f32 %v208, %v224
    %v256 = vmul.f32 %v213, %v224
    %v257 = vmul.f32 %v218, %v224
    %v258 = vld [vmem:[%s2] sm:$0x1]
    %v260 = vlaneseq
    %v261 = vshrl.u32 %v260, 7
    %v262 = vsub.s32 0, %v261
    %v263 = vrot.slane %v258, %v262
    %v265 = vadd.f32 %v226, %v263
    %v266 = vadd.f32 %v227, %v263
    %v267 = vadd.f32 %v228, %v263
    %v268 = vadd.f32 %v229, %v263
    %v269 = vadd.f32 %v230, %v263
    %v270 = vadd.f32 %v231, %v263
    %v271 = vadd.f32 %v232, %v263
    %v272 = vadd.f32 %v233, %v263
    %v273 = vadd.f32 %v234, %v263
    %v274 = vadd.f32 %v235, %v263
    %v275 = vadd.f32 %v236, %v263
    %v276 = vadd.f32 %v237, %v263
    %v277 = vadd.f32 %v238, %v263
    %v278 = vadd.f32 %v239, %v263
    %v279 = vadd.f32 %v240, %v263
    %v280 = vadd.f32 %v241, %v263
    %v281 = vadd.f32 %v242, %v263
    %v282 = vadd.f32 %v243, %v263
    %v283 = vadd.f32 %v244, %v263
    %v284 = vadd.f32 %v245, %v263
    %v285 = vadd.f32 %v246, %v263
    %v286 = vadd.f32 %v247, %v263
    %v287 = vadd.f32 %v248, %v263
    %v288 = vadd.f32 %v249, %v263
    %v289 = vadd.f32 %v250, %v263
    %v290 = vadd.f32 %v251, %v263
    %v291 = vadd.f32 %v252, %v263
    %v292 = vadd.f32 %v253, %v263
    %v293 = vadd.f32 %v254, %v263
    %v294 = vadd.f32 %v255, %v263
    %v295 = vadd.f32 %v256, %v263
    %v296 = vadd.f32 %v257, %v263
    %v297 = vmax.f32 %v265, 0.0
    %v298 = vmax.f32 %v266, 0.0
    %v299 = vmax.f32 %v267, 0.0
    %v300 = vmax.f32 %v268, 0.0
    %v301 = vmax.f32 %v269, 0.0
    %v302 = vmax.f32 %v270, 0.0
    %v303 = vmax.f32 %v271, 0.0
    %v304 = vmax.f32 %v272, 0.0
    %v305 = vmax.f32 %v273, 0.0
    %v306 = vmax.f32 %v274, 0.0
    %v307 = vmax.f32 %v275, 0.0
    %v308 = vmax.f32 %v276, 0.0
    %v309 = vmax.f32 %v277, 0.0
    %v310 = vmax.f32 %v278, 0.0
    %v311 = vmax.f32 %v279, 0.0
    %v312 = vmax.f32 %v280, 0.0
    %v313 = vmax.f32 %v281, 0.0
    %v314 = vmax.f32 %v282, 0.0
    %v315 = vmax.f32 %v283, 0.0
    %v316 = vmax.f32 %v284, 0.0
    %v317 = vmax.f32 %v285, 0.0
    %v318 = vmax.f32 %v286, 0.0
    %v319 = vmax.f32 %v287, 0.0
    %v320 = vmax.f32 %v288, 0.0
    %v321 = vmax.f32 %v289, 0.0
    %v322 = vmax.f32 %v290, 0.0
    %v323 = vmax.f32 %v291, 0.0
    %v324 = vmax.f32 %v292, 0.0
    %v325 = vmax.f32 %v293, 0.0
    %v326 = vmax.f32 %v294, 0.0
    %v327 = vmax.f32 %v295, 0.0
    %v328 = vmax.f32 %v296, 0.0
    %v329 = vld [vmem:[%s3] sm:$0xff]
    %v330 = vld [vmem:[%s3 + $0x8] sm:$0xff]
    %v331 = vld [vmem:[%s3 + $0x10] sm:$0xff]
    %v332 = vld [vmem:[%s3 + $0x18] sm:$0xff]
    %v333 = vld [vmem:[%s3 + $0x20] sm:$0xff]
    %v334 = vld [vmem:[%s3 + $0x28] sm:$0xff]
    %v335 = vld [vmem:[%s3 + $0x30] sm:$0xff]
    %v336 = vld [vmem:[%s3 + $0x38] sm:$0xff]
    %v337 = vld [vmem:[%s4] sm:$0x1]
    %v339 = vlaneseq
    %v340 = vshrl.u32 %v339, 7
    %v341 = vsub.s32 0, %v340
    %v342 = vrot.slane %v337, %v341
    %vm344 = vcmask 523264
    %v346 = vsel %vm344, %v297, 0
    %v349 = vsel %vm344, %v298, 0
    %v352 = vsel %vm344, %v299, 0
    %v355 = vsel %vm344, %v300, 0
    %v358 = vsel %vm344, %v301, 0
    %v361 = vsel %vm344, %v302, 0
    %v364 = vsel %vm344, %v303, 0
    %v367 = vsel %vm344, %v304, 0
    %v370 = vsel %vm344, %v305, 0
    %v373 = vsel %vm344, %v306, 0
    %v376 = vsel %vm344, %v307, 0
    %v379 = vsel %vm344, %v308, 0
    %v382 = vsel %vm344, %v309, 0
    %v385 = vsel %vm344, %v310, 0
    %v388 = vsel %vm344, %v311, 0
    %v391 = vsel %vm344, %v312, 0
    %v394 = vsel %vm344, %v313, 0
    %v397 = vsel %vm344, %v314, 0
    %v400 = vsel %vm344, %v315, 0
    %v403 = vsel %vm344, %v316, 0
    %v406 = vsel %vm344, %v317, 0
    %v409 = vsel %vm344, %v318, 0
    %v412 = vsel %vm344, %v319, 0
    %v415 = vsel %vm344, %v320, 0
    %v418 = vsel %vm344, %v321, 0
    %v421 = vsel %vm344, %v322, 0
    %v424 = vsel %vm344, %v323, 0
    %v427 = vsel %vm344, %v324, 0
    %v430 = vsel %vm344, %v325, 0
    %v433 = vsel %vm344, %v326, 0
    %v436 = vsel %vm344, %v327, 0
    %v439 = vsel %vm344, %v328, 0
    %441 = vmatprep.subr.mxu0 0.0
    %442 = vmatpush1.msra.mxu0 %v329
    %443 = vmatprep.subr.mxu0 0.0
    %444 = vmatpush1.msra.mxu0 %v330
    %445 = vmatprep.subr.mxu0 0.0
    %446 = vmatpush1.msra.mxu0 %v331
    %447 = vmatprep.subr.mxu0 0.0
    %448 = vmatpush1.msra.mxu0 %v332
    %449 = vmatprep.subr.mxu0 0.0
    %450 = vmatpush1.msra.mxu0 %v333
    %451 = vmatprep.subr.mxu0 0.0
    %452 = vmatpush1.msra.mxu0 %v334
    %453 = vmatprep.subr.mxu0 0.0
    %454 = vmatpush1.msra.mxu0 %v335
    %455 = vmatprep.subr.mxu0 0.0
    %456 = vmatpush1.msra.mxu0 %v336
    %457 = vmatprep.subr.mxu0 0.0
    %458 = vmatpush1.msra.mxu0 0.0
    %459 = vmatprep.subr.mxu0 0.0
    %460 = vmatpush1.msra.mxu0 0.0
    %461 = vmatprep.subr.mxu0 0.0
    %462 = vmatpush1.msra.mxu0 0.0
    %463 = vmatprep.subr.mxu0 0.0
    %464 = vmatpush1.msra.mxu0 0.0
    %465 = vmatprep.subr.mxu0 0.0
    %466 = vmatpush1.msra.mxu0 0.0
    %467 = vmatprep.subr.mxu0 0.0
    %468 = vmatpush1.msra.mxu0 0.0
    %469 = vmatprep.subr.mxu0 0.0
    %470 = vmatpush1.msra.mxu0 0.0
    %471 = vmatprep.subr.mxu0 0.0
    %472 = vmatpush1.msra.mxu0 0.0
    %473 = vmatprep.subr.mxu0 0.0
    %474 = vmatpush1.msra.mxu0 0.0
    %475 = vmatprep.subr.mxu0 0.0
    %476 = vmatpush1.msra.mxu0 0.0
    %477 = vmatprep.subr.mxu0 0.0
    %478 = vmatpush1.msra.mxu0 0.0
    %479 = vmatprep.subr.mxu0 0.0
    %480 = vmatpush1.msra.mxu0 0.0
    %481 = vmatprep.subr.mxu0 0.0
    %482 = vmatpush1.msra.mxu0 0.0
    %483 = vmatprep.subr.mxu0 0.0
    %484 = vmatpush1.msra.mxu0 0.0
    %485 = vmatprep.subr.mxu0 0.0
    %486 = vmatpush1.msra.mxu0 0.0
    %487 = vmatprep.subr.mxu0 0.0
    %488 = vmatpush1.msra.mxu0 0.0
    %489 = vmatprep.subr.mxu0 0.0
    %490 = vmatpush1.msra.mxu0 0.0
    %491 = vmatprep.subr.mxu0 0.0
    %492 = vmatpush1.msra.mxu0 0.0
    %493 = vmatprep.subr.mxu0 0.0
    %494 = vmatpush1.msra.mxu0 0.0
    %495 = vmatprep.subr.mxu0 0.0
    %496 = vmatpush1.msra.mxu0 0.0
    %497 = vmatprep.subr.mxu0 0.0
    %498 = vmatpush1.msra.mxu0 0.0
    %499 = vmatprep.subr.mxu0 0.0
    %500 = vmatpush1.msra.mxu0 0.0
    %501 = vmatprep.subr.mxu0 0.0
    %502 = vmatpush1.msra.mxu0 0.0
    %503 = vmatprep.subr.mxu0 0.0
    %504 = vmatpush1.msra.mxu0 0.0
    %505 = vmatprep.mubr.f32.mxu0 0.0
    %506 = vmatmul.mubr.f32.gmra.mrb[0].mxu0 %v346
    %v507 = vpop.f32.mrb[0].mxu0
    %v508 = vadd.f32 %v342, %v507
    %v509 = vpop.f32.mrb[0].mxu0
    %510 = vmatprep.mubr.f32.mxu0 0.0
    %511 = vmatmul.mubr.f32.gmra.mrb[0].mxu0 %v349
    %v512 = vpop.f32.mrb[0].mxu0
    %v513 = vadd.f32 %v342, %v512
    %v514 = vpop.f32.mrb[0].mxu0
    %515 = vmatprep.mubr.f32.mxu0 0.0
    %516 = vmatmul.mubr.f32.gmra.mrb[0].mxu0 %v352
    %v517 = vpop.f32.mrb[0].mxu0
    %v518 = vadd.f32 %v342, %v517
    %v519 = vpop.f32.mrb[0].mxu0
    %520 = vmatprep.mubr.f32.mxu0 0.0
    %521 = vmatmul.mubr.f32.gmra.mrb[0].mxu0 %v355
    %v522 = vpop.f32.mrb[0].mxu0
    %v523 = vadd.f32 %v342, %v522
    %v524 = vpop.f32.mrb[0].mxu0
    %525 = vmatprep.mubr.f32.mxu0 0.0
    %526 = vmatmul.mubr.f32.gmra.mrb[0].mxu0 %v358
    %v527 = vpop.f32.mrb[0].mxu0
    %v528 = vadd.f32 %v342, %v527
    %v529 = vpop.f32.mrb[0].mxu0
    %530 = vmatprep.mubr.f32.mxu0 0.0
    %531 = vmatmul.mubr.f32.gmra.mrb[0].mxu0 %v361
    %v532 = vpop.f32.mrb[0].mxu0
    %v533 = vadd.f32 %v342, %v532
    %v534 = vpop.f32.mrb[0].mxu0
    %535 = vmatprep.mubr.f32.mxu0 0.0
    %536 = vmatmul.mubr.f32.gmra.mrb[0].mxu0 %v364
    %v537 = vpop.f32.mrb[0].mxu0
    %v538 = vadd.f32 %v342, %v537
    %v539 = vpop.f32.mrb[0].mxu0
    %540 = vmatprep.mubr.f32.mxu0 0.0
    %541 = vmatmul.mubr.f32.gmra.mrb[0].mxu0 %v367
    %v542 = vpop.f32.mrb[0].mxu0
    %v543 = vadd.f32 %v342, %v542
    %v544 = vpop.f32.mrb[0].mxu0
    %545 = vmatprep.mubr.f32.mxu0 0.0
    %546 = vmatmul.mubr.f32.gmra.mrb[0].mxu0 %v370
    %v547 = vpop.f32.mrb[0].mxu0
    %v548 = vadd.f32 %v342, %v547
    %v549 = vpop.f32.mrb[0].mxu0
    %550 = vmatprep.mubr.f32.mxu0 0.0
    %551 = vmatmul.mubr.f32.gmra.mrb[0].mxu0 %v373
    %v552 = vpop.f32.mrb[0].mxu0
    %v553 = vadd.f32 %v342, %v552
    %v554 = vpop.f32.mrb[0].mxu0
    %555 = vmatprep.mubr.f32.mxu0 0.0
    %556 = vmatmul.mubr.f32.gmra.mrb[0].mxu0 %v376
    %v557 = vpop.f32.mrb[0].mxu0
    %v558 = vadd.f32 %v342, %v557
    %v559 = vpop.f32.mrb[0].mxu0
    %560 = vmatprep.mubr.f32.mxu0 0.0
    %561 = vmatmul.mubr.f32.gmra.mrb[0].mxu0 %v379
    %v562 = vpop.f32.mrb[0].mxu0
    %v563 = vadd.f32 %v342, %v562
    %v564 = vpop.f32.mrb[0].mxu0
    %565 = vmatprep.mubr.f32.mxu0 0.0
    %566 = vmatmul.mubr.f32.gmra.mrb[0].mxu0 %v382
    %v567 = vpop.f32.mrb[0].mxu0
    %v568 = vadd.f32 %v342, %v567
    %v569 = vpop.f32.mrb[0].mxu0
    %570 = vmatprep.mubr.f32.mxu0 0.0
    %571 = vmatmul.mubr.f32.gmra.mrb[0].mxu0 %v385
    %v572 = vpop.f32.mrb[0].mxu0
    %v573 = vadd.f32 %v342, %v572
    %v574 = vpop.f32.mrb[0].mxu0
    %575 = vmatprep.mubr.f32.mxu0 0.0
    %576 = vmatmul.mubr.f32.gmra.mrb[0].mxu0 %v388
    %v577 = vpop.f32.mrb[0].mxu0
    %v578 = vadd.f32 %v342, %v577
    %v579 = vpop.f32.mrb[0].mxu0
    %580 = vmatprep.mubr.f32.mxu0 0.0
    %581 = vmatmul.mubr.f32.gmra.mrb[0].mxu0 %v391
    %v582 = vpop.f32.mrb[0].mxu0
    %v583 = vadd.f32 %v342, %v582
    %v584 = vpop.f32.mrb[0].mxu0
    %585 = vmatprep.mubr.f32.mxu0 0.0
    %586 = vmatmul.mubr.f32.gmra.mrb[0].mxu0 %v394
    %v587 = vpop.f32.mrb[0].mxu0
    %v588 = vadd.f32 %v342, %v587
    %v589 = vpop.f32.mrb[0].mxu0
    %590 = vmatprep.mubr.f32.mxu0 0.0
    %591 = vmatmul.mubr.f32.gmra.mrb[0].mxu0 %v397
    %v592 = vpop.f32.mrb[0].mxu0
    %v593 = vadd.f32 %v342, %v592
    %v594 = vpop.f32.mrb[0].mxu0
    %595 = vmatprep.mubr.f32.mxu0 0.0
    %596 = vmatmul.mubr.f32.gmra.mrb[0].mxu0 %v400
    %v597 = vpop.f32.mrb[0].mxu0
    %v598 = vadd.f32 %v342, %v597
    %v599 = vpop.f32.mrb[0].mxu0
    %600 = vmatprep.mubr.f32.mxu0 0.0
    %601 = vmatmul.mubr.f32.gmra.mrb[0].mxu0 %v403
    %v602 = vpop.f32.mrb[0].mxu0
    %v603 = vadd.f32 %v342, %v602
    %v604 = vpop.f32.mrb[0].mxu0
    %605 = vmatprep.mubr.f32.mxu0 0.0
    %606 = vmatmul.mubr.f32.gmra.mrb[0].mxu0 %v406
    %v607 = vpop.f32.mrb[0].mxu0
    %v608 = vadd.f32 %v342, %v607
    %v609 = vpop.f32.mrb[0].mxu0
    %610 = vmatprep.mubr.f32.mxu0 0.0
    %611 = vmatmul.mubr.f32.gmra.mrb[0].mxu0 %v409
    %v612 = vpop.f32.mrb[0].mxu0
    %v613 = vadd.f32 %v342, %v612
    %v614 = vpop.f32.mrb[0].mxu0
    %615 = vmatprep.mubr.f32.mxu0 0.0
    %616 = vmatmul.mubr.f32.gmra.mrb[0].mxu0 %v412
    %v617 = vpop.f32.mrb[0].mxu0
    %v618 = vadd.f32 %v342, %v617
    %v619 = vpop.f32.mrb[0].mxu0
    %620 = vmatprep.mubr.f32.mxu0 0.0
    %621 = vmatmul.mubr.f32.gmra.mrb[0].mxu0 %v415
    %v622 = vpop.f32.mrb[0].mxu0
    %v623 = vadd.f32 %v342, %v622
    %v624 = vpop.f32.mrb[0].mxu0
    %625 = vmatprep.mubr.f32.mxu0 0.0
    %626 = vmatmul.mubr.f32.gmra.mrb[0].mxu0 %v418
    %v627 = vpop.f32.mrb[0].mxu0
    %v628 = vadd.f32 %v342, %v627
    %v629 = vpop.f32.mrb[0].mxu0
    %630 = vmatprep.mubr.f32.mxu0 0.0
    %631 = vmatmul.mubr.f32.gmra.mrb[0].mxu0 %v421
    %v632 = vpop.f32.mrb[0].mxu0
    %v633 = vadd.f32 %v342, %v632
    %v634 = vpop.f32.mrb[0].mxu0
    %635 = vmatprep.mubr.f32.mxu0 0.0
    %636 = vmatmul.mubr.f32.gmra.mrb[0].mxu0 %v424
    %v637 = vpop.f32.mrb[0].mxu0
    %v638 = vadd.f32 %v342, %v637
    %v639 = vpop.f32.mrb[0].mxu0
    %640 = vmatprep.mubr.f32.mxu0 0.0
    %641 = vmatmul.mubr.f32.gmra.mrb[0].mxu0 %v427
    %v642 = vpop.f32.mrb[0].mxu0
    %v643 = vadd.f32 %v342, %v642
    %v644 = vpop.f32.mrb[0].mxu0
    %645 = vmatprep.mubr.f32.mxu0 0.0
    %646 = vmatmul.mubr.f32.gmra.mrb[0].mxu0 %v430
    %v647 = vpop.f32.mrb[0].mxu0
    %v648 = vadd.f32 %v342, %v647
    %v649 = vpop.f32.mrb[0].mxu0
    %650 = vmatprep.mubr.f32.mxu0 0.0
    %651 = vmatmul.mubr.f32.gmra.mrb[0].mxu0 %v433
    %v652 = vpop.f32.mrb[0].mxu0
    %v653 = vadd.f32 %v342, %v652
    %v654 = vpop.f32.mrb[0].mxu0
    %655 = vmatprep.mubr.f32.mxu0 0.0
    %656 = vmatmul.mubr.f32.gmra.mrb[0].mxu0 %v436
    %v657 = vpop.f32.mrb[0].mxu0
    %v658 = vadd.f32 %v342, %v657
    %v659 = vpop.f32.mrb[0].mxu0
    %660 = vmatprep.mubr.f32.mxu0 0.0
    %661 = vmatmul.mubr.f32.gmra.mrb[0].mxu0 %v439
    %v662 = vpop.f32.mrb[0].mxu0
    %v663 = vadd.f32 %v342, %v662
    %v664 = vpop.f32.mrb[0].mxu0
    %665 = vdwg.mxu0
    %v666 = vmax.f32 %v508, 0.0
    %v667 = vmax.f32 %v513, 0.0
    %v668 = vmax.f32 %v518, 0.0
    %v669 = vmax.f32 %v523, 0.0
    %v670 = vmax.f32 %v528, 0.0
    %v671 = vmax.f32 %v533, 0.0
    %v672 = vmax.f32 %v538, 0.0
    %v673 = vmax.f32 %v543, 0.0
    %v674 = vmax.f32 %v548, 0.0
    %v675 = vmax.f32 %v553, 0.0
    %v676 = vmax.f32 %v558, 0.0
    %v677 = vmax.f32 %v563, 0.0
    %v678 = vmax.f32 %v568, 0.0
    %v679 = vmax.f32 %v573, 0.0
    %v680 = vmax.f32 %v578, 0.0
    %v681 = vmax.f32 %v583, 0.0
    %v682 = vmax.f32 %v588, 0.0
    %v683 = vmax.f32 %v593, 0.0
    %v684 = vmax.f32 %v598, 0.0
    %v685 = vmax.f32 %v603, 0.0
    %v686 = vmax.f32 %v608, 0.0
    %v687 = vmax.f32 %v613, 0.0
    %v688 = vmax.f32 %v618, 0.0
    %v689 = vmax.f32 %v623, 0.0
    %v690 = vmax.f32 %v628, 0.0
    %v691 = vmax.f32 %v633, 0.0
    %v692 = vmax.f32 %v638, 0.0
    %v693 = vmax.f32 %v643, 0.0
    %v694 = vmax.f32 %v648, 0.0
    %v695 = vmax.f32 %v653, 0.0
    %v696 = vmax.f32 %v658, 0.0
    %v697 = vmax.f32 %v663, 0.0
    %v698 = vld [vmem:[%s5] sm:$0xff]
    %v699 = vld [vmem:[%s5 + $0x8] sm:$0xff]
    %v700 = vld [vmem:[%s5 + $0x10] sm:$0xff]
    %v701 = vld [vmem:[%s5 + $0x18] sm:$0xff]
    %v702 = vld [vmem:[%s5 + $0x20] sm:$0xff]
    %v703 = vld [vmem:[%s5 + $0x28] sm:$0xff]
    %v704 = vld [vmem:[%s5 + $0x30] sm:$0xff]
    %v705 = vld [vmem:[%s5 + $0x38] sm:$0xff]
    %v706 = vld [vmem:[%s6] sm:$0x1]
    %v708 = vlaneseq
    %v709 = vshrl.u32 %v708, 7
    %v710 = vsub.s32 0, %v709
    %v711 = vrot.slane %v706, %v710
    %v714 = vsel %vm344, %v666, 0
    %v717 = vsel %vm344, %v667, 0
    %v720 = vsel %vm344, %v668, 0
    %v723 = vsel %vm344, %v669, 0
    %v726 = vsel %vm344, %v670, 0
    %v729 = vsel %vm344, %v671, 0
    %v732 = vsel %vm344, %v672, 0
    %v735 = vsel %vm344, %v673, 0
    %v738 = vsel %vm344, %v674, 0
    %v741 = vsel %vm344, %v675, 0
    %v744 = vsel %vm344, %v676, 0
    %v747 = vsel %vm344, %v677, 0
    %v750 = vsel %vm344, %v678, 0
    %v753 = vsel %vm344, %v679, 0
    %v756 = vsel %vm344, %v680, 0
    %v759 = vsel %vm344, %v681, 0
    %v762 = vsel %vm344, %v682, 0
    %v765 = vsel %vm344, %v683, 0
    %v768 = vsel %vm344, %v684, 0
    %v771 = vsel %vm344, %v685, 0
    %v774 = vsel %vm344, %v686, 0
    %v777 = vsel %vm344, %v687, 0
    %v780 = vsel %vm344, %v688, 0
    %v783 = vsel %vm344, %v689, 0
    %v786 = vsel %vm344, %v690, 0
    %v789 = vsel %vm344, %v691, 0
    %v792 = vsel %vm344, %v692, 0
    %v795 = vsel %vm344, %v693, 0
    %v798 = vsel %vm344, %v694, 0
    %v801 = vsel %vm344, %v695, 0
    %v804 = vsel %vm344, %v696, 0
    %v807 = vsel %vm344, %v697, 0
    %809 = vmatprep.subr.mxu0 0.0
    %810 = vmatpush1.msra.mxu0 %v698
    %811 = vmatprep.subr.mxu0 0.0
    %812 = vmatpush1.msra.mxu0 %v699
    %813 = vmatprep.subr.mxu0 0.0
    %814 = vmatpush1.msra.mxu0 %v700
    %815 = vmatprep.subr.mxu0 0.0
    %816 = vmatpush1.msra.mxu0 %v701
    %817 = vmatprep.subr.mxu0 0.0
    %818 = vmatpush1.msra.mxu0 %v702
    %819 = vmatprep.subr.mxu0 0.0
    %820 = vmatpush1.msra.mxu0 %v703
    %821 = vmatprep.subr.mxu0 0.0
    %822 = vmatpush1.msra.mxu0 %v704
    %823 = vmatprep.subr.mxu0 0.0
    %824 = vmatpush1.msra.mxu0 %v705
    %825 = vmatprep.subr.mxu0 0.0
    %826 = vmatpush1.msra.mxu0 0.0
    %827 = vmatprep.subr.mxu0 0.0
    %828 = vmatpush1.msra.mxu0 0.0
    %829 = vmatprep.subr.mxu0 0.0
    %830 = vmatpush1.msra.mxu0 0.0
    %831 = vmatprep.subr.mxu0 0.0
    %832 = vmatpush1.msra.mxu0 0.0
    %833 = vmatprep.subr.mxu0 0.0
    %834 = vmatpush1.msra.mxu0 0.0
    %835 = vmatprep.subr.mxu0 0.0
    %836 = vmatpush1.msra.mxu0 0.0
    %837 = vmatprep.subr.mxu0 0.0
    %838 = vmatpush1.msra.mxu0 0.0
    %839 = vmatprep.subr.mxu0 0.0
    %840 = vmatpush1.msra.mxu0 0.0
    %841 = vmatprep.subr.mxu0 0.0
    %842 = vmatpush1.msra.mxu0 0.0
    %843 = vmatprep.subr.mxu0 0.0
    %844 = vmatpush1.msra.mxu0 0.0
    %845 = vmatprep.subr.mxu0 0.0
    %846 = vmatpush1.msra.mxu0 0.0
    %847 = vmatprep.subr.mxu0 0.0
    %848 = vmatpush1.msra.mxu0 0.0
    %849 = vmatprep.subr.mxu0 0.0
    %850 = vmatpush1.msra.mxu0 0.0
    %851 = vmatprep.subr.mxu0 0.0
    %852 = vmatpush1.msra.mxu0 0.0
    %853 = vmatprep.subr.mxu0 0.0
    %854 = vmatpush1.msra.mxu0 0.0
    %855 = vmatprep.subr.mxu0 0.0
    %856 = vmatpush1.msra.mxu0 0.0
    %857 = vmatprep.subr.mxu0 0.0
    %858 = vmatpush1.msra.mxu0 0.0
    %859 = vmatprep.subr.mxu0 0.0
    %860 = vmatpush1.msra.mxu0 0.0
    %861 = vmatprep.subr.mxu0 0.0
    %862 = vmatpush1.msra.mxu0 0.0
    %863 = vmatprep.subr.mxu0 0.0
    %864 = vmatpush1.msra.mxu0 0.0
    %865 = vmatprep.subr.mxu0 0.0
    %866 = vmatpush1.msra.mxu0 0.0
    %867 = vmatprep.subr.mxu0 0.0
    %868 = vmatpush1.msra.mxu0 0.0
    %869 = vmatprep.subr.mxu0 0.0
    %870 = vmatpush1.msra.mxu0 0.0
    %871 = vmatprep.subr.mxu0 0.0
    %872 = vmatpush1.msra.mxu0 0.0
    %873 = vmatprep.mubr.f32.mxu0 0.0
    %874 = vmatmul.mubr.f32.gmra.mrb[0].mxu0 %v714
    %v875 = vpop.f32.mrb[0].mxu0
    %v876 = vadd.f32 %v711, %v875
    %v877 = vpop.f32.mrb[0].mxu0
    %878 = vmatprep.mubr.f32.mxu0 0.0
    %879 = vmatmul.mubr.f32.gmra.mrb[0].mxu0 %v717
    %v880 = vpop.f32.mrb[0].mxu0
    %v881 = vadd.f32 %v711, %v880
    %v882 = vpop.f32.mrb[0].mxu0
    %883 = vmatprep.mubr.f32.mxu0 0.0
    %884 = vmatmul.mubr.f32.gmra.mrb[0].mxu0 %v720
    %v885 = vpop.f32.mrb[0].mxu0
    %v886 = vadd.f32 %v711, %v885
    %v887 = vpop.f32.mrb[0].mxu0
    %888 = vmatprep.mubr.f32.mxu0 0.0
    %889 = vmatmul.mubr.f32.gmra.mrb[0].mxu0 %v723
    %v890 = vpop.f32.mrb[0].mxu0
    %v891 = vadd.f32 %v711, %v890
    %v892 = vpop.f32.mrb[0].mxu0
    %893 = vmatprep.mubr.f32.mxu0 0.0
    %894 = vmatmul.mubr.f32.gmra.mrb[0].mxu0 %v726
    %v895 = vpop.f32.mrb[0].mxu0
    %v896 = vadd.f32 %v711, %v895
    %v897 = vpop.f32.mrb[0].mxu0
    %898 = vmatprep.mubr.f32.mxu0 0.0
    %899 = vmatmul.mubr.f32.gmra.mrb[0].mxu0 %v729
    %v900 = vpop.f32.mrb[0].mxu0
    %v901 = vadd.f32 %v711, %v900
    %v902 = vpop.f32.mrb[0].mxu0
    %903 = vmatprep.mubr.f32.mxu0 0.0
    %904 = vmatmul.mubr.f32.gmra.mrb[0].mxu0 %v732
    %v905 = vpop.f32.mrb[0].mxu0
    %v906 = vadd.f32 %v711, %v905
    %v907 = vpop.f32.mrb[0].mxu0
    %908 = vmatprep.mubr.f32.mxu0 0.0
    %909 = vmatmul.mubr.f32.gmra.mrb[0].mxu0 %v735
    %v910 = vpop.f32.mrb[0].mxu0
    %v911 = vadd.f32 %v711, %v910
    %v912 = vpop.f32.mrb[0].mxu0
    %913 = vmatprep.mubr.f32.mxu0 0.0
    %914 = vmatmul.mubr.f32.gmra.mrb[0].mxu0 %v738
    %v915 = vpop.f32.mrb[0].mxu0
    %v916 = vadd.f32 %v711, %v915
    %v917 = vpop.f32.mrb[0].mxu0
    %918 = vmatprep.mubr.f32.mxu0 0.0
    %919 = vmatmul.mubr.f32.gmra.mrb[0].mxu0 %v741
    %v920 = vpop.f32.mrb[0].mxu0
    %v921 = vadd.f32 %v711, %v920
    %v922 = vpop.f32.mrb[0].mxu0
    %923 = vmatprep.mubr.f32.mxu0 0.0
    %924 = vmatmul.mubr.f32.gmra.mrb[0].mxu0 %v744
    %v925 = vpop.f32.mrb[0].mxu0
    %v926 = vadd.f32 %v711, %v925
    %v927 = vpop.f32.mrb[0].mxu0
    %928 = vmatprep.mubr.f32.mxu0 0.0
    %929 = vmatmul.mubr.f32.gmra.mrb[0].mxu0 %v747
    %v930 = vpop.f32.mrb[0].mxu0
    %v931 = vadd.f32 %v711, %v930
    %v932 = vpop.f32.mrb[0].mxu0
    %933 = vmatprep.mubr.f32.mxu0 0.0
    %934 = vmatmul.mubr.f32.gmra.mrb[0].mxu0 %v750
    %v935 = vpop.f32.mrb[0].mxu0
    %v936 = vadd.f32 %v711, %v935
    %v937 = vpop.f32.mrb[0].mxu0
    %938 = vmatprep.mubr.f32.mxu0 0.0
    %939 = vmatmul.mubr.f32.gmra.mrb[0].mxu0 %v753
    %v940 = vpop.f32.mrb[0].mxu0
    %v941 = vadd.f32 %v711, %v940
    %v942 = vpop.f32.mrb[0].mxu0
    %943 = vmatprep.mubr.f32.mxu0 0.0
    %944 = vmatmul.mubr.f32.gmra.mrb[0].mxu0 %v756
    %v945 = vpop.f32.mrb[0].mxu0
    %v946 = vadd.f32 %v711, %v945
    %v947 = vpop.f32.mrb[0].mxu0
    %948 = vmatprep.mubr.f32.mxu0 0.0
    %949 = vmatmul.mubr.f32.gmra.mrb[0].mxu0 %v759
    %v950 = vpop.f32.mrb[0].mxu0
    %v951 = vadd.f32 %v711, %v950
    %v952 = vpop.f32.mrb[0].mxu0
    %953 = vmatprep.mubr.f32.mxu0 0.0
    %954 = vmatmul.mubr.f32.gmra.mrb[0].mxu0 %v762
    %v955 = vpop.f32.mrb[0].mxu0
    %v956 = vadd.f32 %v711, %v955
    %v957 = vpop.f32.mrb[0].mxu0
    %958 = vmatprep.mubr.f32.mxu0 0.0
    %959 = vmatmul.mubr.f32.gmra.mrb[0].mxu0 %v765
    %v960 = vpop.f32.mrb[0].mxu0
    %v961 = vadd.f32 %v711, %v960
    %v962 = vpop.f32.mrb[0].mxu0
    %963 = vmatprep.mubr.f32.mxu0 0.0
    %964 = vmatmul.mubr.f32.gmra.mrb[0].mxu0 %v768
    %v965 = vpop.f32.mrb[0].mxu0
    %v966 = vadd.f32 %v711, %v965
    %v967 = vpop.f32.mrb[0].mxu0
    %968 = vmatprep.mubr.f32.mxu0 0.0
    %969 = vmatmul.mubr.f32.gmra.mrb[0].mxu0 %v771
    %v970 = vpop.f32.mrb[0].mxu0
    %v971 = vadd.f32 %v711, %v970
    %v972 = vpop.f32.mrb[0].mxu0
    %973 = vmatprep.mubr.f32.mxu0 0.0
    %974 = vmatmul.mubr.f32.gmra.mrb[0].mxu0 %v774
    %v975 = vpop.f32.mrb[0].mxu0
    %v976 = vadd.f32 %v711, %v975
    %v977 = vpop.f32.mrb[0].mxu0
    %978 = vmatprep.mubr.f32.mxu0 0.0
    %979 = vmatmul.mubr.f32.gmra.mrb[0].mxu0 %v777
    %v980 = vpop.f32.mrb[0].mxu0
    %v981 = vadd.f32 %v711, %v980
    %v982 = vpop.f32.mrb[0].mxu0
    %983 = vmatprep.mubr.f32.mxu0 0.0
    %984 = vmatmul.mubr.f32.gmra.mrb[0].mxu0 %v780
    %v985 = vpop.f32.mrb[0].mxu0
    %v986 = vadd.f32 %v711, %v985
    %v987 = vpop.f32.mrb[0].mxu0
    %988 = vmatprep.mubr.f32.mxu0 0.0
    %989 = vmatmul.mubr.f32.gmra.mrb[0].mxu0 %v783
    %v990 = vpop.f32.mrb[0].mxu0
    %v991 = vadd.f32 %v711, %v990
    %v992 = vpop.f32.mrb[0].mxu0
    %993 = vmatprep.mubr.f32.mxu0 0.0
    %994 = vmatmul.mubr.f32.gmra.mrb[0].mxu0 %v786
    %v995 = vpop.f32.mrb[0].mxu0
    %v996 = vadd.f32 %v711, %v995
    %v997 = vpop.f32.mrb[0].mxu0
    %998 = vmatprep.mubr.f32.mxu0 0.0
    %999 = vmatmul.mubr.f32.gmra.mrb[0].mxu0 %v789
    %v1000 = vpop.f32.mrb[0].mxu0
    %v1001 = vadd.f32 %v711, %v1000
    %v1002 = vpop.f32.mrb[0].mxu0
    %1003 = vmatprep.mubr.f32.mxu0 0.0
    %1004 = vmatmul.mubr.f32.gmra.mrb[0].mxu0 %v792
    %v1005 = vpop.f32.mrb[0].mxu0
    %v1006 = vadd.f32 %v711, %v1005
    %v1007 = vpop.f32.mrb[0].mxu0
    %1008 = vmatprep.mubr.f32.mxu0 0.0
    %1009 = vmatmul.mubr.f32.gmra.mrb[0].mxu0 %v795
    %v1010 = vpop.f32.mrb[0].mxu0
    %v1011 = vadd.f32 %v711, %v1010
    %v1012 = vpop.f32.mrb[0].mxu0
    %1013 = vmatprep.mubr.f32.mxu0 0.0
    %1014 = vmatmul.mubr.f32.gmra.mrb[0].mxu0 %v798
    %v1015 = vpop.f32.mrb[0].mxu0
    %v1016 = vadd.f32 %v711, %v1015
    %v1017 = vpop.f32.mrb[0].mxu0
    %1018 = vmatprep.mubr.f32.mxu0 0.0
    %1019 = vmatmul.mubr.f32.gmra.mrb[0].mxu0 %v801
    %v1020 = vpop.f32.mrb[0].mxu0
    %v1021 = vadd.f32 %v711, %v1020
    %v1022 = vpop.f32.mrb[0].mxu0
    %1023 = vmatprep.mubr.f32.mxu0 0.0
    %1024 = vmatmul.mubr.f32.gmra.mrb[0].mxu0 %v804
    %v1025 = vpop.f32.mrb[0].mxu0
    %v1026 = vadd.f32 %v711, %v1025
    %v1027 = vpop.f32.mrb[0].mxu0
    %1028 = vmatprep.mubr.f32.mxu0 0.0
    %1029 = vmatmul.mubr.f32.gmra.mrb[0].mxu0 %v807
    %v1030 = vpop.f32.mrb[0].mxu0
    %v1031 = vadd.f32 %v711, %v1030
    %v1032 = vpop.f32.mrb[0].mxu0
    %1033 = vdwg.mxu0
    %1034 = vst [vmem:[#allocation2] sm:$0xff] %v876
    %1035 = vst [vmem:[#allocation2 + $0x8] sm:$0xff] %v881
    %1036 = vst [vmem:[#allocation2 + $0x10] sm:$0xff] %v886
    %1037 = vst [vmem:[#allocation2 + $0x18] sm:$0xff] %v891
    %1038 = vst [vmem:[#allocation2 + $0x20] sm:$0xff] %v896
    %1039 = vst [vmem:[#allocation2 + $0x28] sm:$0xff] %v901
    %1040 = vst [vmem:[#allocation2 + $0x30] sm:$0xff] %v906
    %1041 = vst [vmem:[#allocation2 + $0x38] sm:$0xff] %v911
    %1042 = vst [vmem:[#allocation2 + $0x40] sm:$0xff] %v916
    %1043 = vst [vmem:[#allocation2 + $0x48] sm:$0xff] %v921
    %1044 = vst [vmem:[#allocation2 + $0x50] sm:$0xff] %v926
    %1045 = vst [vmem:[#allocation2 + $0x58] sm:$0xff] %v931
    %1046 = vst [vmem:[#allocation2 + $0x60] sm:$0xff] %v936
    %1047 = vst [vmem:[#allocation2 + $0x68] sm:$0xff] %v941
    %1048 = vst [vmem:[#allocation2 + $0x70] sm:$0xff] %v946
    %1049 = vst [vmem:[#allocation2 + $0x78] sm:$0xff] %v951
    %1050 = vst [vmem:[#allocation2 + $0x80] sm:$0xff] %v956
    %1051 = vst [vmem:[#allocation2 + $0x88] sm:$0xff] %v961
    %1052 = vst [vmem:[#allocation2 + $0x90] sm:$0xff] %v966
    %1053 = vst [vmem:[#allocation2 + $0x98] sm:$0xff] %v971
    %1054 = vst [vmem:[#allocation2 + $0xa0] sm:$0xff] %v976
    %1055 = vst [vmem:[#allocation2 + $0xa8] sm:$0xff] %v981
    %1056 = vst [vmem:[#allocation2 + $0xb0] sm:$0xff] %v986
    %1057 = vst [vmem:[#allocation2 + $0xb8] sm:$0xff] %v991
    %1058 = vst [vmem:[#allocation2 + $0xc0] sm:$0xff] %v996
    %1059 = vst [vmem:[#allocation2 + $0xc8] sm:$0xff] %v1001
    %1060 = vst [vmem:[#allocation2 + $0xd0] sm:$0xff] %v1006
    %1061 = vst [vmem:[#allocation2 + $0xd8] sm:$0xff] %v1011
    %1062 = vst [vmem:[#allocation2 + $0xe0] sm:$0xff] %v1016
    %1063 = vst [vmem:[#allocation2 + $0xe8] sm:$0xff] %v1021
    %1064 = vst [vmem:[#allocation2 + $0xf0] sm:$0xff] %v1026
    %1065 = vst [vmem:[#allocation2 + $0xf8] sm:$0xff] %v1031
    // Predicated region
    $region30: #{tpu_custom_call.1} parent=1 // pred_check
      _
    $region31: #{tpu_custom_call.1} parent=1 // pred_check_branch
      %1067 = sbr.rel (0) target = $region33
    $region32: #{tpu_custom_call.1} parent=1 // pred_region
      %s1069 = ssub.s32 4096, 4096
      %1070 = vsyncadd [#allocation3], %s1069
      %s1071 = sshll.u32 [#allocation2], 4
      %s1072 = int_to_ptr.vmem [resolvable:$true] %s1071
      %1077 = dma.vmem_to_hbm [thread:$0]  %s1072, 4096, %s7, [#allocation3], 128, 128, 8
    $region33: #{tpu_custom_call.1} parent=1 // pred_fallthru
      _
    // Predicated region
    $region34: #{tpu_custom_call.1} parent=1 // pred_check
      _
    $region35: #{tpu_custom_call.1} parent=1 // pred_check_branch
      %1079 = sbr.rel (0) target = $region37
    $region36: #{tpu_custom_call.1} parent=1 // pred_region
      %1080 = dma.done [#allocation3], 4096
    $region37: #{tpu_custom_call.1} parent=1 // pred_fallthru
      _
    %1081 = vsyncpa [#allocation3], 1

</llo_original>
